<compile_context>
chip_gen: v5e
topology: v5e:2x2
jax: 0.10.0
libtpu: 0.0.40
codegen_flags: <defaults>
</compile_context>

<pallas_src>
import functools

import jax
import jax.numpy as jnp
from jax.experimental import pallas as pl
from jax.experimental.pallas import tpu as pltpu

BN_EPS = 1e-5


def _block0_kernel(dilation, L,
                   x_ref, s1_ref, b1_ref, w1_ref, b2_ref, w2_ref, b3_ref, w3_ref,
                   o_ref):
    d = dilation
    x = x_ref[...]                                   # (Cout, NB*L), lanes = NB*L
    # residual path: downsample is None (first=False, stride=1) -> x0 = x (pre-BN)

    # bn1 (folded scale/shift) + ReLU
    h = jnp.maximum(s1_ref[...] * x + b1_ref[...], 0.0)

    # cv1 (1x1 conv == matmul) with bn2 scale pre-folded into its rows; + bn2 shift + ReLU
    h = jnp.maximum(
        jnp.dot(w1_ref[...], h, preferred_element_type=jnp.float32) + b2_ref[...], 0.0)

    # cv2: kernel_size=3 dilated conv (padding=dilation, stride=1) as a single
    # stacked-K matmul.  Taps shifted with pltpu.roll (XLU slot, non-negative
    # shifts only) and zero-masked at per-batch-segment boundaries so taps don't
    # leak across batch elements (wrap-around lanes land in the masked region).
    NL = h.shape[1]
    lane = jax.lax.broadcasted_iota(jnp.int32, h.shape, 1)
    local = lane % L                                                  # position within segment
    t0 = jnp.where(local >= d, pltpu.roll(h, d, axis=1), 0.0)        # h[l - d]
    t2 = jnp.where(local < L - d, pltpu.roll(h, NL - d, axis=1), 0.0)  # h[l + d]
    hstack = jnp.concatenate([t0, h, t2], axis=0)                    # (3*Cin, NB*L)
    y = jnp.dot(w2_ref[...], hstack, preferred_element_type=jnp.float32)

    # bn3 shift (scale folded into w2) + ReLU
    h = jnp.maximum(y + b3_ref[...], 0.0)

    # cv3 (1x1 conv) + residual add
    o_ref[...] = (jnp.dot(w3_ref[...], h, preferred_element_type=jnp.float32)
                  + x).astype(o_ref.dtype)


def _bn_scale_shift(g, b, m, v):
    s = g / jnp.sqrt(v + BN_EPS)
    return s, b - m * s


def block0_forward(x, params, dilation, batch_block=None):
    """block0.forward with first=False, stride=1, res_on=True (eval-mode BN)."""
    N, Cout, L = x.shape
    Cin = params["w1"].shape[0]
    NB = N if batch_block is None else batch_block
    assert N % NB == 0
    NL = NB * L

    s1, b1 = _bn_scale_shift(params["bn1_g"], params["bn1_b"], params["bn1_m"], params["bn1_v"])
    s2, b2 = _bn_scale_shift(params["bn2_g"], params["bn2_b"], params["bn2_m"], params["bn2_v"])
    s3, b3 = _bn_scale_shift(params["bn3_g"], params["bn3_b"], params["bn3_m"], params["bn3_v"])

    # Fold bn2 scale into cv1's output rows and bn3 scale into each cv2 tap's
    # output rows; stack cv2 taps along the contraction dim -> (Cin, 3*Cin).
    w1s = s2[:, None] * params["w1"]                                        # (Cin, Cout)
    w2 = params["w2"]                                                       # (Cin, Cin, 3)
    w2s = jnp.concatenate([s3[:, None] * w2[:, :, k] for k in range(3)], axis=1)  # (Cin, 3*Cin)
    w3 = params["w3"]                                                       # (Cout, Cin)

    # Channel-major, lane-dense layout: (Cout, N*L).
    x_cm = jnp.transpose(x, (1, 0, 2)).reshape(Cout, N * L)

    def full(shape):
        return pl.BlockSpec(shape, lambda i, _n=len(shape): (0,) * _n)

    kernel = functools.partial(_block0_kernel, dilation, L)
    out_cm = pl.pallas_call(
        kernel,
        out_shape=jax.ShapeDtypeStruct((Cout, N * L), x.dtype),
        grid=(N // NB,),
        in_specs=[
            pl.BlockSpec((Cout, NL), lambda i: (0, i)),
            full((Cout, 1)), full((Cout, 1)), full((Cin, Cout)),
            full((Cin, 1)), full((Cin, 3 * Cin)),
            full((Cin, 1)), full((Cout, Cin)),
        ],
        out_specs=pl.BlockSpec((Cout, NL), lambda i: (0, i)),
        compiler_params=pltpu.CompilerParams(dimension_semantics=("parallel",)),
    )(x_cm, s1[:, None], b1[:, None], w1s, b2[:, None], w2s, b3[:, None], w3)

    return jnp.transpose(out_cm.reshape(Cout, N, L), (1, 0, 2))


def block0_reference(x, params, dilation):
    """Pure-JAX reference (same eval-mode BN semantics) for validation."""
    d = dilation
    L = x.shape[-1]

    def bn(h, g, b, m, v):
        return (g[None, :, None] * (h - m[None, :, None])
                / jnp.sqrt(v[None, :, None] + BN_EPS) + b[None, :, None])

    x0 = x
    h = jax.nn.relu(bn(x, params["bn1_g"], params["bn1_b"], params["bn1_m"], params["bn1_v"]))
    h = jnp.einsum("oc,ncl->nol", params["w1"], h)
    h = jax.nn.relu(bn(h, params["bn2_g"], params["bn2_b"], params["bn2_m"], params["bn2_v"]))
    hp = jnp.pad(h, ((0, 0), (0, 0), (d, d)))
    w2 = params["w2"]  # (Cin, Cin, 3)
    y = sum(jnp.einsum("oc,ncl->nol", w2[:, :, k], hp[:, :, k * d:k * d + L]) for k in range(3))
    h = jax.nn.relu(bn(y, params["bn3_g"], params["bn3_b"], params["bn3_m"], params["bn3_v"]))
    return jnp.einsum("oc,ncl->nol", params["w3"], h) + x0


def init_params(key, in_channels, out_channels):
    ks = jax.random.split(key, 16)
    f32 = jnp.float32
    return {
        # cv1: Conv1d(out_channels, in_channels, k=1, bias=False) -> (Cin, Cout)
        "w1": 0.1 * jax.random.normal(ks[0], (in_channels, out_channels), f32),
        # cv2: Conv1d(in_channels, in_channels, k=3, bias=False) -> (Cin, Cin, 3)
        "w2": 0.1 * jax.random.normal(ks[1], (in_channels, in_channels, 3), f32),
        # cv3: Conv1d(in_channels, out_channels, k=1, bias=False) -> (Cout, Cin)
        "w3": 0.1 * jax.random.normal(ks[2], (out_channels, in_channels), f32),
        # bn1 over out_channels (first=False)
        "bn1_g": 0.5 + jax.random.uniform(ks[3], (out_channels,), f32),
        "bn1_b": 0.1 * jax.random.normal(ks[4], (out_channels,), f32),
        "bn1_m": 0.1 * jax.random.normal(ks[5], (out_channels,), f32),
        "bn1_v": 0.5 + 0.5 * jax.random.uniform(ks[6], (out_channels,), f32),
        # bn2 / bn3 over in_channels
        "bn2_g": 0.5 + jax.random.uniform(ks[7], (in_channels,), f32),
        "bn2_b": 0.1 * jax.random.normal(ks[8], (in_channels,), f32),
        "bn2_m": 0.1 * jax.random.normal(ks[9], (in_channels,), f32),
        "bn2_v": 0.5 + 0.5 * jax.random.uniform(ks[10], (in_channels,), f32),
        "bn3_g": 0.5 + jax.random.uniform(ks[11], (in_channels,), f32),
        "bn3_b": 0.1 * jax.random.normal(ks[12], (in_channels,), f32),
        "bn3_m": 0.1 * jax.random.normal(ks[13], (in_channels,), f32),
        "bn3_v": 0.5 + 0.5 * jax.random.uniform(ks[14], (in_channels,), f32),
    }


if __name__ == "__main__":
    # block0(in_channels=8, out_channels=16, dilation=2, stride=1, first=False, res_on=True)
    in_channels, out_channels, dilation = 8, 16, 2
    N, L = 2, 128  # input is (N, out_channels, L) since first=False

    key = jax.random.PRNGKey(0)
    k_x, k_p = jax.random.split(key)
    x = jax.random.normal(k_x, (N, out_channels, L), jnp.float32)
    params = init_params(k_p, in_channels, out_channels)

    fwd = jax.jit(functools.partial(block0_forward, dilation=dilation))
    out = jax.block_until_ready(fwd(x, params))
    ref = jax.block_until_ready(block0_reference(x, params, dilation))

    assert out.shape == (N, out_channels, L) and out.dtype == jnp.float32
    assert jnp.allclose(out, ref, rtol=1e-4, atol=1e-4), float(jnp.max(jnp.abs(out - ref)))
    print("KERNEL_OK")
</pallas_src>

<mosaic_0001>
module attributes {stable_mosaic.version = 11 : i64} {
  func.func @_block0_kernel(%arg0: i32, %arg1: memref<16x256xf32, #tpu.memory_space<vmem>>, %arg2: memref<16x1xf32, #tpu.memory_space<vmem>>, %arg3: memref<16x1xf32, #tpu.memory_space<vmem>>, %arg4: memref<8x16xf32, #tpu.memory_space<vmem>>, %arg5: memref<8x1xf32, #tpu.memory_space<vmem>>, %arg6: memref<8x24xf32, #tpu.memory_space<vmem>>, %arg7: memref<8x1xf32, #tpu.memory_space<vmem>>, %arg8: memref<16x8xf32, #tpu.memory_space<vmem>>, %arg9: memref<16x256xf32, #tpu.memory_space<vmem>>) attributes {dimension_semantics = [#tpu.dimension_semantics<parallel>], iteration_bounds = array<i64: 1>, scalar_prefetch = 0 : i64, scratch_operands = 0 : i64, tpu.core_type = #tpu.core_type<tc>, window_params = [{transform_indices = @transform_0, window_bounds = array<i64: 16, 256>}, {pipeline_mode = #tpu.pipeline_mode<synchronous>, transform_indices = @transform_1, window_bounds = array<i64: 16, 1>}, {pipeline_mode = #tpu.pipeline_mode<synchronous>, transform_indices = @transform_2, window_bounds = array<i64: 16, 1>}, {pipeline_mode = #tpu.pipeline_mode<synchronous>, transform_indices = @transform_3, window_bounds = array<i64: 8, 16>}, {pipeline_mode = #tpu.pipeline_mode<synchronous>, transform_indices = @transform_4, window_bounds = array<i64: 8, 1>}, {pipeline_mode = #tpu.pipeline_mode<synchronous>, transform_indices = @transform_5, window_bounds = array<i64: 8, 24>}, {pipeline_mode = #tpu.pipeline_mode<synchronous>, transform_indices = @transform_6, window_bounds = array<i64: 8, 1>}, {pipeline_mode = #tpu.pipeline_mode<synchronous>, transform_indices = @transform_7, window_bounds = array<i64: 16, 8>}, {transform_indices = @transform_8, window_bounds = array<i64: 16, 256>}]} {
    %c0 = arith.constant 0 : index
    %c0_0 = arith.constant 0 : index
    %0 = vector.load %arg1[%c0, %c0_0] : memref<16x256xf32, #tpu.memory_space<vmem>>, vector<16x256xf32>
    %c0_1 = arith.constant 0 : index
    %c0_2 = arith.constant 0 : index
    %1 = vector.load %arg2[%c0_1, %c0_2] : memref<16x1xf32, #tpu.memory_space<vmem>>, vector<16x1xf32>
    %2 = vector.broadcast %1 : vector<16x1xf32> to vector<16x256xf32>
    %3 = arith.mulf %2, %0 : vector<16x256xf32>
    %c0_3 = arith.constant 0 : index
    %c0_4 = arith.constant 0 : index
    %4 = vector.load %arg3[%c0_3, %c0_4] : memref<16x1xf32, #tpu.memory_space<vmem>>, vector<16x1xf32>
    %5 = vector.broadcast %4 : vector<16x1xf32> to vector<16x256xf32>
    %6 = arith.addf %3, %5 : vector<16x256xf32>
    %cst = arith.constant 0.000000e+00 : f32
    %7 = vector.broadcast %cst : f32 to vector<16x256xf32>
    %8 = arith.maximumf %6, %7 : vector<16x256xf32>
    %c0_5 = arith.constant 0 : index
    %c0_6 = arith.constant 0 : index
    %9 = vector.load %arg4[%c0_5, %c0_6] : memref<8x16xf32, #tpu.memory_space<vmem>>, vector<8x16xf32>
    %cst_7 = arith.constant dense<0.000000e+00> : vector<8x256xf32>
    %10 = tpu.matmul %9, %8, %cst_7 {dimension_numbers = #tpu.dot_dimension_numbers<[1], [0], [0], [1], [0, 0, 1, 1], [], []>} : vector<8x16xf32>, vector<16x256xf32>, vector<8x256xf32> -> vector<8x256xf32>
    %c0_8 = arith.constant 0 : index
    %c0_9 = arith.constant 0 : index
    %11 = vector.load %arg5[%c0_8, %c0_9] : memref<8x1xf32, #tpu.memory_space<vmem>>, vector<8x1xf32>
    %12 = vector.broadcast %11 : vector<8x1xf32> to vector<8x256xf32>
    %13 = arith.addf %10, %12 : vector<8x256xf32>
    %cst_10 = arith.constant 0.000000e+00 : f32
    %14 = vector.broadcast %cst_10 : f32 to vector<8x256xf32>
    %15 = arith.maximumf %13, %14 : vector<8x256xf32>
    %16 = tpu.iota {dimensions = array<i32: 1>} : vector<8x256xi32>
    %c128_i32 = arith.constant 128 : i32
    %c0_i32 = arith.constant 0 : i32
    %17 = arith.cmpi eq, %c128_i32, %c0_i32 : i32
    %c1_i32 = arith.constant 1 : i32
    %18 = arith.select %17, %c1_i32, %c128_i32 : i32
    %19 = vector.broadcast %18 : i32 to vector<8x256xi32>
    %20 = arith.remsi %16, %19 : vector<8x256xi32>
    %c0_i32_11 = arith.constant 0 : i32
    %21 = vector.broadcast %c0_i32_11 : i32 to vector<8x256xi32>
    %22 = arith.cmpi ne, %20, %21 : vector<8x256xi32>
    %c0_i32_12 = arith.constant 0 : i32
    %23 = vector.broadcast %c0_i32_12 : i32 to vector<8x256xi32>
    %24 = arith.cmpi slt, %20, %23 : vector<8x256xi32>
    %c0_i32_13 = arith.constant 0 : i32
    %25 = arith.cmpi slt, %18, %c0_i32_13 : i32
    %26 = vector.broadcast %25 : i1 to vector<8x256xi1>
    %27 = vector.broadcast %26 : vector<8x256xi1> to vector<8x256xi1>
    %28 = arith.xori %24, %27 : vector<8x256xi1>
    %29 = arith.andi %28, %22 : vector<8x256xi1>
    %30 = vector.broadcast %18 : i32 to vector<8x256xi32>
    %31 = arith.addi %20, %30 : vector<8x256xi32>
    %32 = arith.select %29, %31, %20 : vector<8x256xi1>, vector<8x256xi32>
    %c2_i32 = arith.constant 2 : i32
    %33 = vector.broadcast %c2_i32 : i32 to vector<8x256xi32>
    %34 = arith.cmpi sge, %32, %33 : vector<8x256xi32>
    %c2_i32_14 = arith.constant 2 : i32
    %35 = tpu.dynamic_rotate %15 by %c2_i32_14 dim 1 : vector<8x256xf32>, i32 -> vector<8x256xf32>
    %cst_15 = arith.constant 0.000000e+00 : f32
    %36 = vector.broadcast %cst_15 : f32 to vector<8x256xf32>
    %37 = arith.select %34, %35, %36 : vector<8x256xi1>, vector<8x256xf32>
    %c126_i32 = arith.constant 126 : i32
    %38 = vector.broadcast %c126_i32 : i32 to vector<8x256xi32>
    %39 = arith.cmpi slt, %32, %38 : vector<8x256xi32>
    %c254_i32 = arith.constant 254 : i32
    %40 = tpu.dynamic_rotate %15 by %c254_i32 dim 1 : vector<8x256xf32>, i32 -> vector<8x256xf32>
    %cst_16 = arith.constant 0.000000e+00 : f32
    %41 = vector.broadcast %cst_16 : f32 to vector<8x256xf32>
    %42 = arith.select %39, %40, %41 : vector<8x256xi1>, vector<8x256xf32>
    %43 = tpu.concatenate %37, %15, %42 in 0 : vector<8x256xf32>, vector<8x256xf32>, vector<8x256xf32> -> vector<24x256xf32>
    %c0_17 = arith.constant 0 : index
    %c0_18 = arith.constant 0 : index
    %44 = vector.load %arg6[%c0_17, %c0_18] : memref<8x24xf32, #tpu.memory_space<vmem>>, vector<8x24xf32>
    %cst_19 = arith.constant dense<0.000000e+00> : vector<8x256xf32>
    %45 = tpu.matmul %44, %43, %cst_19 {dimension_numbers = #tpu.dot_dimension_numbers<[1], [0], [0], [1], [0, 0, 1, 1], [], []>} : vector<8x24xf32>, vector<24x256xf32>, vector<8x256xf32> -> vector<8x256xf32>
    %c0_20 = arith.constant 0 : index
    %c0_21 = arith.constant 0 : index
    %46 = vector.load %arg7[%c0_20, %c0_21] : memref<8x1xf32, #tpu.memory_space<vmem>>, vector<8x1xf32>
    %47 = vector.broadcast %46 : vector<8x1xf32> to vector<8x256xf32>
    %48 = arith.addf %45, %47 : vector<8x256xf32>
    %cst_22 = arith.constant 0.000000e+00 : f32
    %49 = vector.broadcast %cst_22 : f32 to vector<8x256xf32>
    %50 = arith.maximumf %48, %49 : vector<8x256xf32>
    %c0_23 = arith.constant 0 : index
    %c0_24 = arith.constant 0 : index
    %51 = vector.load %arg8[%c0_23, %c0_24] : memref<16x8xf32, #tpu.memory_space<vmem>>, vector<16x8xf32>
    %cst_25 = arith.constant dense<0.000000e+00> : vector<16x256xf32>
    %52 = tpu.matmul %51, %50, %cst_25 {dimension_numbers = #tpu.dot_dimension_numbers<[1], [0], [0], [1], [0, 0, 1, 1], [], []>} : vector<16x8xf32>, vector<8x256xf32>, vector<16x256xf32> -> vector<16x256xf32>
    %53 = arith.addf %52, %0 : vector<16x256xf32>
    %c0_26 = arith.constant 0 : index
    %c0_27 = arith.constant 0 : index
    %54 = vector.load %arg9[%c0_26, %c0_27] : memref<16x256xf32, #tpu.memory_space<vmem>>, vector<16x256xf32>
    tpu.vector_store %arg9[%c0_26, %c0_27], %53 {strides = array<i32>} : memref<16x256xf32, #tpu.memory_space<vmem>>, vector<16x256xf32>,
    return
  }
  func.func @transform_0(%arg0: i32) -> (i32, i32) {
    %c0_i32 = arith.constant 0 : i32
    %c0_i32_0 = arith.constant 0 : i32
    return %c0_i32, %arg0 : i32, i32
  }
  func.func @transform_1(%arg0: i32) -> (i32, i32) {
    %c0_i32 = arith.constant 0 : i32
    %c0_i32_0 = arith.constant 0 : i32
    %c0_i32_1 = arith.constant 0 : i32
    return %c0_i32, %c0_i32_0 : i32, i32
  }
  func.func @transform_2(%arg0: i32) -> (i32, i32) {
    %c0_i32 = arith.constant 0 : i32
    %c0_i32_0 = arith.constant 0 : i32
    %c0_i32_1 = arith.constant 0 : i32
    return %c0_i32, %c0_i32_0 : i32, i32
  }
  func.func @transform_3(%arg0: i32) -> (i32, i32) {
    %c0_i32 = arith.constant 0 : i32
    %c0_i32_0 = arith.constant 0 : i32
    %c0_i32_1 = arith.constant 0 : i32
    return %c0_i32, %c0_i32_0 : i32, i32
  }
  func.func @transform_4(%arg0: i32) -> (i32, i32) {
    %c0_i32 = arith.constant 0 : i32
    %c0_i32_0 = arith.constant 0 : i32
    %c0_i32_1 = arith.constant 0 : i32
    return %c0_i32, %c0_i32_0 : i32, i32
  }
  func.func @transform_5(%arg0: i32) -> (i32, i32) {
    %c0_i32 = arith.constant 0 : i32
    %c0_i32_0 = arith.constant 0 : i32
    %c0_i32_1 = arith.constant 0 : i32
    return %c0_i32, %c0_i32_0 : i32, i32
  }
  func.func @transform_6(%arg0: i32) -> (i32, i32) {
    %c0_i32 = arith.constant 0 : i32
    %c0_i32_0 = arith.constant 0 : i32
    %c0_i32_1 = arith.constant 0 : i32
    return %c0_i32, %c0_i32_0 : i32, i32
  }
  func.func @transform_7(%arg0: i32) -> (i32, i32) {
    %c0_i32 = arith.constant 0 : i32
    %c0_i32_0 = arith.constant 0 : i32
    %c0_i32_1 = arith.constant 0 : i32
    return %c0_i32, %c0_i32_0 : i32, i32
  }
  func.func @transform_8(%arg0: i32) -> (i32, i32) {
    %c0_i32 = arith.constant 0 : i32
    %c0_i32_0 = arith.constant 0 : i32
    return %c0_i32, %arg0 : i32, i32
  }
}

</mosaic_0001>

<llo_original>
// kernel: block0_forward.1
$region0: #{block0_forward.1}
  #allocation0 [shape = 'u32[]', space=smem, size = 0x4, offset = 0x4, fixed_abs, tag = 'smem constant byte address 0x4 - core index']
  #allocation1 [shape = 'u32[72,128]{1,0:T(1,128)}', space=vmem, size = 0x9000, scoped, tag = 'internal scratch']
  %s0 = inlined_call_operand.vmem [shape: f32[16,256], index: 0, kind: input, shape index: {}]
  %s1 = inlined_call_operand.vmem [shape: f32[16,1], index: 1, kind: input, shape index: {}]
  %s2 = inlined_call_operand.vmem [shape: f32[16,1], index: 2, kind: input, shape index: {}]
  %s3 = inlined_call_operand.vmem [shape: f32[8,16], index: 3, kind: input, shape index: {}]
  %s4 = inlined_call_operand.vmem [shape: f32[8,1], index: 4, kind: input, shape index: {}]
  %s5 = inlined_call_operand.vmem [shape: f32[8,24], index: 5, kind: input, shape index: {}]
  %s6 = inlined_call_operand.vmem [shape: f32[8,1], index: 6, kind: input, shape index: {}]
  %s7 = inlined_call_operand.vmem [shape: f32[16,8], index: 7, kind: input, shape index: {}]
  %s8 = inlined_call_operand.vmem [shape: f32[16,256], index: 8, kind: output, shape index: {}]
  %s9 = sld [smem:[#allocation0]]
  $region42: #{block0_forward.1} parent=0
    _
  %s11 = ssub.s32 1, %s9
  %s12 = scalar_select 0, %s11, %s9
  // Predicated region
  $region2: #{block0_forward.1} parent=0 // pred_check
    _
  $region3: #{block0_forward.1} parent=0 // pred_check_branch
    %14 = sbr.rel (0) target = $region5
  $region4: #{block0_forward.1} parent=0 // pred_region
    _
  $region5: #{block0_forward.1} parent=0 // pred_fallthru
    _
  // Predicated region
  $region6: #{block0_forward.1} parent=0 // pred_check
    _
  $region7: #{block0_forward.1} parent=0 // pred_check_branch
    %16 = sbr.rel (0) target = $region9
  $region8: #{block0_forward.1} parent=0 // pred_region
    _
  $region9: #{block0_forward.1} parent=0 // pred_fallthru
    _
  // Predicated region
  $region10: #{block0_forward.1} parent=0 // pred_check
    _
  $region11: #{block0_forward.1} parent=0 // pred_check_branch
    %18 = sbr.rel (0) target = $region13
  $region12: #{block0_forward.1} parent=0 // pred_region
    _
  $region13: #{block0_forward.1} parent=0 // pred_fallthru
    _
  // Predicated region
  $region14: #{block0_forward.1} parent=0 // pred_check
    _
  $region15: #{block0_forward.1} parent=0 // pred_check_branch
    %20 = sbr.rel (0) target = $region17
  $region16: #{block0_forward.1} parent=0 // pred_region
    _
  $region17: #{block0_forward.1} parent=0 // pred_fallthru
    _
  // Predicated region
  $region18: #{block0_forward.1} parent=0 // pred_check
    _
  $region19: #{block0_forward.1} parent=0 // pred_check_branch
    %22 = sbr.rel (0) target = $region21
  $region20: #{block0_forward.1} parent=0 // pred_region
    _
  $region21: #{block0_forward.1} parent=0 // pred_fallthru
    _
  // Predicated region
  $region22: #{block0_forward.1} parent=0 // pred_check
    _
  $region23: #{block0_forward.1} parent=0 // pred_check_branch
    %24 = sbr.rel (0) target = $region25
  $region24: #{block0_forward.1} parent=0 // pred_region
    _
  $region25: #{block0_forward.1} parent=0 // pred_fallthru
    _
  // Predicated region
  $region26: #{block0_forward.1} parent=0 // pred_check
    _
  $region27: #{block0_forward.1} parent=0 // pred_check_branch
    %26 = sbr.rel (0) target = $region29
  $region28: #{block0_forward.1} parent=0 // pred_region
    _
  $region29: #{block0_forward.1} parent=0 // pred_fallthru
    _
  // Predicated region
  $region30: #{block0_forward.1} parent=0 // pred_check
    _
  $region31: #{block0_forward.1} parent=0 // pred_check_branch
    %28 = sbr.rel (0) target = $region33
  $region32: #{block0_forward.1} parent=0 // pred_region
    _
  $region33: #{block0_forward.1} parent=0 // pred_fallthru
    _
  %v29 = vld [vmem:[%s0] sm:$0xff]
  %v30 = vld [vmem:[%s0 + $0x8] sm:$0xff]
  %v31 = vld [vmem:[%s0 + $0x10] sm:$0xff]
  %v32 = vld [vmem:[%s0 + $0x18] sm:$0xff]
  %v33 = vld [vmem:[%s1] sm:$0xff]
  %v34 = vld [vmem:[%s1 + $0x8] sm:$0xff]
  %36 = vset.pattern.permute.xlu0 0
  %37 = vperm.xlu0 %36, %v33
  %v38 = vpop.permute.xlu0 %37
  %41 = vset.pattern.permute.xlu0 0
  %42 = vperm.xlu0 %41, %v34
  %v43 = vpop.permute.xlu0 %42
  %v45 = vmul.f32 %v38, %v29
  %v46 = vmul.f32 %v38, %v30
  %v47 = vmul.f32 %v43, %v31
  %v48 = vmul.f32 %v43, %v32
  %v49 = vld [vmem:[%s2] sm:$0xff]
  %v50 = vld [vmem:[%s2 + $0x8] sm:$0xff]
  %52 = vset.pattern.permute.xlu0 0
  %53 = vperm.xlu0 %52, %v49
  %v54 = vpop.permute.xlu0 %53
  %57 = vset.pattern.permute.xlu0 0
  %58 = vperm.xlu0 %57, %v50
  %v59 = vpop.permute.xlu0 %58
  %v61 = vadd.f32 %v45, %v54
  %v62 = vadd.f32 %v46, %v54
  %v63 = vadd.f32 %v47, %v59
  %v64 = vadd.f32 %v48, %v59
  %v65 = vmax.f32 %v61, 0.0
  %v66 = vmax.f32 %v62, 0.0
  %v67 = vmax.f32 %v63, 0.0
  %v68 = vmax.f32 %v64, 0.0
  %v69 = vld [vmem:[%s3] sm:$0xff]
  %v70 = vld [vmem:[%s4] sm:$0xff]
  %72 = vset.pattern.permute.xlu0 0
  %73 = vperm.xlu0 %72, %v70
  %v74 = vpop.permute.xlu0 %73
  %vm76 = vcmask 130048
  %v78 = vsel %vm76, %v69, 0
  %80 = vmatpush.msra.mxu0 0.0
  %81 = vmatpush.msra.mxu0 0.0
  %82 = vmatpush.msra.mxu0 0.0
  %83 = vmatpush.msra.mxu0 0.0
  %84 = vmatpush.msra.mxu0 0.0
  %85 = vmatpush.msra.mxu0 0.0
  %86 = vmatpush.msra.mxu0 0.0
  %87 = vmatpush.msra.mxu0 0.0
  %88 = vmatpush.msra.mxu0 0.0
  %89 = vmatpush.msra.mxu0 0.0
  %90 = vmatpush.msra.mxu0 0.0
  %91 = vmatpush.msra.mxu0 0.0
  %92 = vmatpush.msra.mxu0 0.0
  %93 = vmatpush.msra.mxu0 0.0
  %94 = vmatpush.msra.mxu0 %v67
  %95 = vmatpush.msra.mxu0 %v65
  %96 = vmatmul.f32.gmra.mxu0 %v78
  %v97 = vpop.f32.mrf.mxu0
  %v98 = vadd.f32 %v74, %v97
  %99 = vdwg.mxu0
  %100 = vmatpush.msra.mxu0 0.0
  %101 = vmatpush.msra.mxu0 0.0
  %102 = vmatpush.msra.mxu0 0.0
  %103 = vmatpush.msra.mxu0 0.0
  %104 = vmatpush.msra.mxu0 0.0
  %105 = vmatpush.msra.mxu0 0.0
  %106 = vmatpush.msra.mxu0 0.0
  %107 = vmatpush.msra.mxu0 0.0
  %108 = vmatpush.msra.mxu0 0.0
  %109 = vmatpush.msra.mxu0 0.0
  %110 = vmatpush.msra.mxu0 0.0
  %111 = vmatpush.msra.mxu0 0.0
  %112 = vmatpush.msra.mxu0 0.0
  %113 = vmatpush.msra.mxu0 0.0
  %114 = vmatpush.msra.mxu0 %v68
  %115 = vmatpush.msra.mxu0 %v66
  %116 = vmatmul.f32.gmra.mxu0 %v78
  %v117 = vpop.f32.mrf.mxu0
  %v118 = vadd.f32 %v74, %v117
  %119 = vdwg.mxu0
  %v120 = vmax.f32 %v98, 0.0
  %v121 = vmax.f32 %v118, 0.0
  %v122 = vlaneseq
  %v123 = vand.u32 %v122, 127
  %v124 = vadd.s32 %v123, 128
  %vm125 = vcmp.lt.s32.totalorder %v123, 0
  %v126 = vsub.s32 0, %v123
  %v127 = vsel %vm125, %v126, %v123
  %v128 = vshrl.u32 %v127, 7
  %v129 = vand.u32 %v127, 127
  %v130 = vsub.s32 0, %v129
  %v131 = vsel %vm125, %v130, %v129
  %vm132 = vcmp.lt.s32.totalorder %v124, 0
  %v133 = vsub.s32 0, %v124
  %v134 = vsel %vm132, %v133, %v124
  %v135 = vshrl.u32 %v134, 7
  %v136 = vand.u32 %v134, 127
  %v137 = vsub.s32 0, %v136
  %v138 = vsel %vm132, %v137, %v136
  %vm139 = vcmp.ne.s32.totalorder %v131, 0
  %vm140 = vcmp.ne.s32.totalorder %v138, 0
  %vm141 = vcmp.lt.s32.totalorder %v131, 0
  %vm142 = vcmp.lt.s32.totalorder %v138, 0
  %vm143 = vmand %vm141, %vm139
  %vm144 = vmand %vm142, %vm140
  %v145 = vadd.s32 %v131, 128
  %v146 = vadd.s32 %v138, 128
  %v147 = vsel %vm143, %v145, %v131
  %v148 = vsel %vm144, %v146, %v138
  %vm149 = vcmp.ge.s32.totalorder %v147, 2
  %vm150 = vcmp.ge.s32.totalorder %v148, 2
  %151 = vrot.lane.b32.xlu0 %v120, 2
  %v152 = vpop.permute.xlu0 %151
  %153 = vrot.lane.b32.xlu0 %v121, 2
  %v154 = vpop.permute.xlu0 %153
  %vm155 = vcmp.lt.s32.totalorder %v123, 2
  %v156 = vsel %vm155, %v152, %v154
  %v157 = vsel %vm155, %v154, %v152
  %v158 = vsel %vm149, %v157, 0.0
  %v159 = vsel %vm150, %v156, 0.0
  %vm160 = vcmp.lt.s32.totalorder %v147, 126
  %vm161 = vcmp.lt.s32.totalorder %v148, 126
  %162 = vrot.lane.b32.xlu0 %v120, 126
  %v163 = vpop.permute.xlu0 %162
  %164 = vrot.lane.b32.xlu0 %v121, 126
  %v165 = vpop.permute.xlu0 %164
  %vm166 = vcmp.lt.s32.totalorder %v123, 126
  %v167 = vsel %vm166, %v163, %v165
  %v168 = vsel %vm166, %v165, %v163
  %v169 = vsel %vm160, %v167, 0.0
  %v170 = vsel %vm161, %v168, 0.0
  %v171 = vld [vmem:[%s5] sm:$0xff]
  %v172 = vld [vmem:[%s6] sm:$0xff]
  %174 = vset.pattern.permute.xlu0 0
  %175 = vperm.xlu0 %174, %v172
  %v176 = vpop.permute.xlu0 %175
  %vm178 = vcmask 195584
  %v180 = vsel %vm178, %v171, 0
  %182 = vmatpush.msra.mxu0 0.0
  %183 = vmatpush.msra.mxu0 0.0
  %184 = vmatpush.msra.mxu0 0.0
  %185 = vmatpush.msra.mxu0 0.0
  %186 = vmatpush.msra.mxu0 0.0
  %187 = vmatpush.msra.mxu0 0.0
  %188 = vmatpush.msra.mxu0 0.0
  %189 = vmatpush.msra.mxu0 0.0
  %190 = vmatpush.msra.mxu0 0.0
  %191 = vmatpush.msra.mxu0 0.0
  %192 = vmatpush.msra.mxu0 0.0
  %193 = vmatpush.msra.mxu0 0.0
  %194 = vmatpush.msra.mxu0 0.0
  %195 = vmatpush.msra.mxu0 %v169
  %196 = vmatpush.msra.mxu0 %v120
  %197 = vmatpush.msra.mxu0 %v158
  %198 = vmatmul.f32.gmra.mxu0 %v180
  %v199 = vpop.f32.mrf.mxu0
  %v200 = vadd.f32 %v176, %v199
  %201 = vdwg.mxu0
  %202 = vmatpush.msra.mxu0 0.0
  %203 = vmatpush.msra.mxu0 0.0
  %204 = vmatpush.msra.mxu0 0.0
  %205 = vmatpush.msra.mxu0 0.0
  %206 = vmatpush.msra.mxu0 0.0
  %207 = vmatpush.msra.mxu0 0.0
  %208 = vmatpush.msra.mxu0 0.0
  %209 = vmatpush.msra.mxu0 0.0
  %210 = vmatpush.msra.mxu0 0.0
  %211 = vmatpush.msra.mxu0 0.0
  %212 = vmatpush.msra.mxu0 0.0
  %213 = vmatpush.msra.mxu0 0.0
  %214 = vmatpush.msra.mxu0 0.0
  %215 = vmatpush.msra.mxu0 %v170
  %216 = vmatpush.msra.mxu0 %v121
  %217 = vmatpush.msra.mxu0 %v159
  %218 = vmatmul.f32.gmra.mxu0 %v180
  %v219 = vpop.f32.mrf.mxu0
  %v220 = vadd.f32 %v176, %v219
  %221 = vdwg.mxu0
  %v222 = vmax.f32 %v200, 0.0
  %v223 = vmax.f32 %v220, 0.0
  %v224 = vld [vmem:[%s7] sm:$0xff]
  %v225 = vld [vmem:[%s7 + $0x8] sm:$0xff]
  %vm226 = vcmask 64512
  %v228 = vsel %vm226, %v224, 0
  %v231 = vsel %vm226, %v225, 0
  %233 = vmatpush.msra.mxu0 0.0
  %234 = vmatpush.msra.mxu0 0.0
  %235 = vmatpush.msra.mxu0 0.0
  %236 = vmatpush.msra.mxu0 0.0
  %237 = vmatpush.msra.mxu0 0.0
  %238 = vmatpush.msra.mxu0 0.0
  %239 = vmatpush.msra.mxu0 0.0
  %240 = vmatpush.msra.mxu0 0.0
  %241 = vmatpush.msra.mxu0 0.0
  %242 = vmatpush.msra.mxu0 0.0
  %243 = vmatpush.msra.mxu0 0.0
  %244 = vmatpush.msra.mxu0 0.0
  %245 = vmatpush.msra.mxu0 0.0
  %246 = vmatpush.msra.mxu0 0.0
  %247 = vmatpush.msra.mxu0 0.0
  %248 = vmatpush.msra.mxu0 %v222
  %249 = vmatmul.f32.gmra.mxu0 %v228
  %v250 = vpop.f32.mrf.mxu0
  %v251 = vadd.f32 %v29, %v250
  %252 = vmatmul.f32.gmra.mxu0 %v231
  %v253 = vpop.f32.mrf.mxu0
  %v254 = vadd.f32 %v31, %v253
  %255 = vdwg.mxu0
  %256 = vmatpush.msra.mxu0 0.0
  %257 = vmatpush.msra.mxu0 0.0
  %258 = vmatpush.msra.mxu0 0.0
  %259 = vmatpush.msra.mxu0 0.0
  %260 = vmatpush.msra.mxu0 0.0
  %261 = vmatpush.msra.mxu0 0.0
  %262 = vmatpush.msra.mxu0 0.0
  %263 = vmatpush.msra.mxu0 0.0
  %264 = vmatpush.msra.mxu0 0.0
  %265 = vmatpush.msra.mxu0 0.0
  %266 = vmatpush.msra.mxu0 0.0
  %267 = vmatpush.msra.mxu0 0.0
  %268 = vmatpush.msra.mxu0 0.0
  %269 = vmatpush.msra.mxu0 0.0
  %270 = vmatpush.msra.mxu0 0.0
  %271 = vmatpush.msra.mxu0 %v223
  %272 = vmatmul.f32.gmra.mxu0 %v228
  %v273 = vpop.f32.mrf.mxu0
  %v274 = vadd.f32 %v30, %v273
  %275 = vmatmul.f32.gmra.mxu0 %v231
  %v276 = vpop.f32.mrf.mxu0
  %v277 = vadd.f32 %v32, %v276
  %278 = vdwg.mxu0
  %279 = vst [vmem:[%s8] sm:$0xff] %v251
  %280 = vst [vmem:[%s8 + $0x8] sm:$0xff] %v274
  %281 = vst [vmem:[%s8 + $0x10] sm:$0xff] %v254
  %282 = vst [vmem:[%s8 + $0x18] sm:$0xff] %v277
  // Predicated region
  $region34: #{block0_forward.1} parent=0 // pred_check
    _
  $region35: #{block0_forward.1} parent=0 // pred_check_branch
    %284 = sbr.rel (0) target = $region37
  $region36: #{block0_forward.1} parent=0 // pred_region
    _
  $region37: #{block0_forward.1} parent=0 // pred_fallthru
    _
  // Predicated region
  $region38: #{block0_forward.1} parent=0 // pred_check
    _
  $region39: #{block0_forward.1} parent=0 // pred_check_branch
    %286 = sbr.rel (0) target = $region41
  $region40: #{block0_forward.1} parent=0 // pred_region
    _
  $region41: #{block0_forward.1} parent=0 // pred_fallthru
    _

</llo_original>
